<compile_context>
chip_gen: v5e
topology: v5e:2x2
jax: 0.10.0
libtpu: 0.0.40
codegen_flags: <defaults>
</compile_context>

<pallas_src>
import jax
import jax.numpy as jnp
from jax.experimental import pallas as pl
from jax.experimental.pallas import tpu as pltpu


def projector2_kernel(x_ref, w1_ref, w2_ref, w3_ref, b3_ref, o_ref):
    x = x_ref[...]

    # fc1[0]: relu(x @ W1)   -- bias-free
    h = jnp.dot(x, w1_ref[...], preferred_element_type=jnp.float32)
    h = jnp.maximum(h, 0.0)

    # fc1[2]: relu(h @ W2)   -- bias-free, output dim == input dim
    y = jnp.dot(h.astype(w2_ref.dtype), w2_ref[...],
                preferred_element_type=jnp.float32)
    y = jnp.maximum(y, 0.0)

    # residual blend + relu
    z = jnp.maximum(0.15 * x.astype(jnp.float32) + 0.85 * y, 0.0)

    # fc2: z @ W3 + b3
    out = jnp.dot(z.astype(w3_ref.dtype), w3_ref[...],
                  preferred_element_type=jnp.float32)
    out = out + b3_ref[...]
    o_ref[...] = out.astype(o_ref.dtype)


def _round_up(v, m):
    return ((v + m - 1) // m) * m


def projector2_forward(x, w1, w2, w3, b3, *, batch_tile=256):
    """x: [B, input_dim]
    w1: [input_dim, hidden_dim]   (torch fc1[0].weight.T)
    w2: [hidden_dim, input_dim]   (torch fc1[2].weight.T)
    w3: [input_dim, output_dim]   (torch fc2.weight.T)
    b3: [output_dim]              (torch fc2.bias)
    """
    B, input_dim = x.shape
    hidden_dim = w1.shape[1]
    output_dim = w3.shape[1]

    # Lane-dense padding: all feature dims -> multiples of 128.
    in_p = _round_up(input_dim, 128)
    hid_p = _round_up(hidden_dim, 128)
    out_p = _round_up(output_dim, 128)

    # Batch tile: multiple of 8 sublanes, capped at `batch_tile` (256 default
    # to fill the 2x256 MXU on v6e/v7x; small batches just pad to 8).
    tb = min(batch_tile, _round_up(B, 8))
    b_p = _round_up(B, tb)

    # Zero padding is semantics-preserving: padded x columns / weight rows /
    # weight columns contribute zeros everywhere; padded rows & output
    # columns are sliced off after the call.
    x_p = jnp.pad(x, ((0, b_p - B), (0, in_p - input_dim)))
    w1_p = jnp.pad(w1, ((0, in_p - input_dim), (0, hid_p - hidden_dim)))
    w2_p = jnp.pad(w2, ((0, hid_p - hidden_dim), (0, in_p - input_dim)))
    w3_p = jnp.pad(w3, ((0, in_p - input_dim), (0, out_p - output_dim)))
    b3_p = jnp.pad(b3.reshape(1, output_dim), ((0, 0), (0, out_p - output_dim)))

    grid = (b_p // tb,)
    itemsize = jnp.dtype(x.dtype).itemsize
    flops = 2 * b_p * (in_p * hid_p + hid_p * in_p + in_p * out_p)
    bytes_accessed = itemsize * (x_p.size + w1_p.size + w2_p.size
                                 + w3_p.size + b3_p.size + b_p * out_p)

    out_padded = pl.pallas_call(
        projector2_kernel,
        out_shape=jax.ShapeDtypeStruct((b_p, out_p), x.dtype),
        grid_spec=pltpu.PrefetchScalarGridSpec(
            num_scalar_prefetch=0,
            grid=grid,
            in_specs=[
                # x: tiled over the batch grid axis
                pl.BlockSpec((tb, in_p), lambda i: (i, 0)),
                # weights / bias: VMEM-resident across all batch tiles
                pl.BlockSpec((in_p, hid_p), lambda i: (0, 0)),
                pl.BlockSpec((hid_p, in_p), lambda i: (0, 0)),
                pl.BlockSpec((in_p, out_p), lambda i: (0, 0)),
                pl.BlockSpec((1, out_p), lambda i: (0, 0)),
            ],
            out_specs=pl.BlockSpec((tb, out_p), lambda i: (i, 0)),
        ),
        compiler_params=pltpu.CompilerParams(
            dimension_semantics=("parallel",),
            vmem_limit_bytes=100 << 20,
        ),
        cost_estimate=pl.CostEstimate(
            flops=flops, transcendentals=0, bytes_accessed=bytes_accessed),
    )(x_p, w1_p, w2_p, w3_p, b3_p)

    return out_padded[:B, :output_dim]


def _reference(x, w1, w2, w3, b3):
    h = jnp.maximum(x @ w1, 0.0)
    y = jnp.maximum(h @ w2, 0.0)
    z = jnp.maximum(0.15 * x + 0.85 * y, 0.0)
    return z @ w3 + b3


if __name__ == "__main__":
    # Small shapes consistent with projector2(input_dim, hidden_dim, output_dim)
    B, input_dim, hidden_dim, output_dim = 8, 32, 64, 16

    key = jax.random.PRNGKey(0)
    kx, kw1, kw2, kw3, kb3 = jax.random.split(key, 5)

    x = jax.random.normal(kx, (B, input_dim), dtype=jnp.float32)
    # Parameters stored as [in, out] = torch W.T
    w1 = jax.random.normal(kw1, (input_dim, hidden_dim), dtype=jnp.float32) * 0.1
    w2 = jax.random.normal(kw2, (hidden_dim, input_dim), dtype=jnp.float32) * 0.1
    w3 = jax.random.normal(kw3, (input_dim, output_dim), dtype=jnp.float32) * 0.1
    b3 = jax.random.normal(kb3, (output_dim,), dtype=jnp.float32) * 0.1

    out = projector2_forward(x, w1, w2, w3, b3)
    out = jax.block_until_ready(out)

    ref = _reference(x, w1, w2, w3, b3)
    assert out.shape == (B, output_dim)
    assert jnp.allclose(out, ref, atol=1e-5, rtol=1e-5)

    # Second check: exercise a multi-step batch grid (remainder padding + tiling)
    B2 = 20
    x2 = jax.random.normal(jax.random.PRNGKey(1), (B2, input_dim), dtype=jnp.float32)
    out2 = jax.block_until_ready(
        projector2_forward(x2, w1, w2, w3, b3, batch_tile=8))
    ref2 = _reference(x2, w1, w2, w3, b3)
    assert out2.shape == (B2, output_dim)
    assert jnp.allclose(out2, ref2, atol=1e-5, rtol=1e-5)

    print("KERNEL_OK")
</pallas_src>

<mosaic_0001>
module attributes {stable_mosaic.version = 11 : i64} {
  func.func @projector2_kernel(%arg0: i32, %arg1: memref<8x128xf32, #tpu.memory_space<vmem>>, %arg2: memref<128x128xf32, #tpu.memory_space<vmem>>, %arg3: memref<128x128xf32, #tpu.memory_space<vmem>>, %arg4: memref<128x128xf32, #tpu.memory_space<vmem>>, %arg5: memref<1x128xf32, #tpu.memory_space<vmem>>, %arg6: memref<8x128xf32, #tpu.memory_space<vmem>>) attributes {dimension_semantics = [#tpu.dimension_semantics<parallel>], iteration_bounds = array<i64: 1>, scalar_prefetch = 0 : i64, scratch_operands = 0 : i64, tpu.core_type = #tpu.core_type<tc>, window_params = [{transform_indices = @transform_0, window_bounds = array<i64: 8, 128>}, {pipeline_mode = #tpu.pipeline_mode<synchronous>, transform_indices = @transform_1, window_bounds = array<i64: 128, 128>}, {pipeline_mode = #tpu.pipeline_mode<synchronous>, transform_indices = @transform_2, window_bounds = array<i64: 128, 128>}, {pipeline_mode = #tpu.pipeline_mode<synchronous>, transform_indices = @transform_3, window_bounds = array<i64: 128, 128>}, {pipeline_mode = #tpu.pipeline_mode<synchronous>, transform_indices = @transform_4, window_bounds = array<i64: 1, 128>}, {transform_indices = @transform_5, window_bounds = array<i64: 8, 128>}]} {
    %c0 = arith.constant 0 : index
    %c0_0 = arith.constant 0 : index
    %0 = vector.load %arg1[%c0, %c0_0] : memref<8x128xf32, #tpu.memory_space<vmem>>, vector<8x128xf32>
    %c0_1 = arith.constant 0 : index
    %c0_2 = arith.constant 0 : index
    %1 = vector.load %arg2[%c0_1, %c0_2] : memref<128x128xf32, #tpu.memory_space<vmem>>, vector<128x128xf32>
    %cst = arith.constant dense<0.000000e+00> : vector<8x128xf32>
    %2 = tpu.matmul %0, %1, %cst {dimension_numbers = #tpu.dot_dimension_numbers<[1], [0], [0], [1], [0, 0, 1, 1], [], []>} : vector<8x128xf32>, vector<128x128xf32>, vector<8x128xf32> -> vector<8x128xf32>
    %cst_3 = arith.constant 0.000000e+00 : f32
    %3 = vector.broadcast %cst_3 : f32 to vector<8x128xf32>
    %4 = arith.maximumf %2, %3 : vector<8x128xf32>
    %c0_4 = arith.constant 0 : index
    %c0_5 = arith.constant 0 : index
    %5 = vector.load %arg3[%c0_4, %c0_5] : memref<128x128xf32, #tpu.memory_space<vmem>>, vector<128x128xf32>
    %cst_6 = arith.constant dense<0.000000e+00> : vector<8x128xf32>
    %6 = tpu.matmul %4, %5, %cst_6 {dimension_numbers = #tpu.dot_dimension_numbers<[1], [0], [0], [1], [0, 0, 1, 1], [], []>} : vector<8x128xf32>, vector<128x128xf32>, vector<8x128xf32> -> vector<8x128xf32>
    %cst_7 = arith.constant 0.000000e+00 : f32
    %7 = vector.broadcast %cst_7 : f32 to vector<8x128xf32>
    %8 = arith.maximumf %6, %7 : vector<8x128xf32>
    %cst_8 = arith.constant 1.500000e-01 : f32
    %9 = vector.broadcast %cst_8 : f32 to vector<8x128xf32>
    %10 = arith.mulf %9, %0 : vector<8x128xf32>
    %cst_9 = arith.constant 8.500000e-01 : f32
    %11 = vector.broadcast %cst_9 : f32 to vector<8x128xf32>
    %12 = arith.mulf %11, %8 : vector<8x128xf32>
    %13 = arith.addf %10, %12 : vector<8x128xf32>
    %cst_10 = arith.constant 0.000000e+00 : f32
    %14 = vector.broadcast %cst_10 : f32 to vector<8x128xf32>
    %15 = arith.maximumf %13, %14 : vector<8x128xf32>
    %c0_11 = arith.constant 0 : index
    %c0_12 = arith.constant 0 : index
    %16 = vector.load %arg4[%c0_11, %c0_12] : memref<128x128xf32, #tpu.memory_space<vmem>>, vector<128x128xf32>
    %cst_13 = arith.constant dense<0.000000e+00> : vector<8x128xf32>
    %17 = tpu.matmul %15, %16, %cst_13 {dimension_numbers = #tpu.dot_dimension_numbers<[1], [0], [0], [1], [0, 0, 1, 1], [], []>} : vector<8x128xf32>, vector<128x128xf32>, vector<8x128xf32> -> vector<8x128xf32>
    %c0_14 = arith.constant 0 : index
    %c0_15 = arith.constant 0 : index
    %18 = vector.load %arg5[%c0_14, %c0_15] : memref<1x128xf32, #tpu.memory_space<vmem>>, vector<1x128xf32>
    %19 = vector.broadcast %18 : vector<1x128xf32> to vector<8x128xf32>
    %20 = arith.addf %17, %19 : vector<8x128xf32>
    %c0_16 = arith.constant 0 : index
    %c0_17 = arith.constant 0 : index
    %21 = vector.load %arg6[%c0_16, %c0_17] : memref<8x128xf32, #tpu.memory_space<vmem>>, vector<8x128xf32>
    tpu.vector_store %arg6[%c0_16, %c0_17], %20 {strides = array<i32>} : memref<8x128xf32, #tpu.memory_space<vmem>>, vector<8x128xf32>,
    return
  }
  func.func @transform_0(%arg0: i32) -> (i32, i32) {
    %c0_i32 = arith.constant 0 : i32
    %c0_i32_0 = arith.constant 0 : i32
    return %arg0, %c0_i32 : i32, i32
  }
  func.func @transform_1(%arg0: i32) -> (i32, i32) {
    %c0_i32 = arith.constant 0 : i32
    %c0_i32_0 = arith.constant 0 : i32
    %c0_i32_1 = arith.constant 0 : i32
    return %c0_i32, %c0_i32_0 : i32, i32
  }
  func.func @transform_2(%arg0: i32) -> (i32, i32) {
    %c0_i32 = arith.constant 0 : i32
    %c0_i32_0 = arith.constant 0 : i32
    %c0_i32_1 = arith.constant 0 : i32
    return %c0_i32, %c0_i32_0 : i32, i32
  }
  func.func @transform_3(%arg0: i32) -> (i32, i32) {
    %c0_i32 = arith.constant 0 : i32
    %c0_i32_0 = arith.constant 0 : i32
    %c0_i32_1 = arith.constant 0 : i32
    return %c0_i32, %c0_i32_0 : i32, i32
  }
  func.func @transform_4(%arg0: i32) -> (i32, i32) {
    %c0_i32 = arith.constant 0 : i32
    %c0_i32_0 = arith.constant 0 : i32
    %c0_i32_1 = arith.constant 0 : i32
    return %c0_i32, %c0_i32_0 : i32, i32
  }
  func.func @transform_5(%arg0: i32) -> (i32, i32) {
    %c0_i32 = arith.constant 0 : i32
    %c0_i32_0 = arith.constant 0 : i32
    return %arg0, %c0_i32 : i32, i32
  }
}

</mosaic_0001>

<llo_original>
// kernel: tpu_custom_call.1
$region0: #{tpu_custom_call.1}
  #allocation0 [shape = 'u32[]', space=smem, size = 0x4, offset = 0x4, fixed_abs, tag = 'smem constant byte address 0x4 - core index']
  #allocation1 [shape = 'u32[72,128]{1,0:T(1,128)}', space=vmem, size = 0x9000, scoped, tag = 'internal scratch']
  %s0 = inlined_call_operand.hbm [shape: f32[8,128], index: 0, kind: input, shape index: {}]
  %s1 = inlined_call_operand.hbm [shape: f32[128,128], index: 1, kind: input, shape index: {}]
  %s2 = inlined_call_operand.hbm [shape: f32[128,128], index: 2, kind: input, shape index: {}]
  %s3 = inlined_call_operand.hbm [shape: f32[128,128], index: 3, kind: input, shape index: {}]
  %s4 = inlined_call_operand.vmem [shape: f32[1,128], index: 4, kind: input, shape index: {}]
  %s5 = inlined_call_operand.hbm [shape: f32[8,128], index: 5, kind: output, shape index: {}]
  %s6 = sld [smem:[#allocation0]]
  $region46: #{tpu_custom_call.1} parent=0
    _
  %s8 = ssub.s32 1, %s6
  %s9 = scalar_select 0, %s8, %s6
  $region1: #{tpu_custom_call.1} parent=0
    #allocation2 [shape = 'u8[4096]{0}', space=vmem, size = 0x1000, scoped, tag = 'input window, operand 0, single buffered']
    #allocation3 [shape = 's32[1]{0}', space=sflag, size = 0x4, scoped, tag = 'scoped memory for tpu_custom_call.1']
    #allocation4 [shape = 's32[1]{0}', space=sflag, size = 0x4, scoped, tag = 'scoped memory for tpu_custom_call.1']
    #allocation5 [shape = 'u8[65536]{0}', space=vmem, size = 0x10000, scoped, tag = 'input window, operand 1, single buffered']
    #allocation6 [shape = 's32[1]{0}', space=sflag, size = 0x4, scoped, tag = 'scoped memory for tpu_custom_call.1']
    #allocation7 [shape = 'u8[65536]{0}', space=vmem, size = 0x10000, scoped, tag = 'input window, operand 2, single buffered']
    #allocation8 [shape = 'u8[65536]{0}', space=vmem, size = 0x10000, scoped, tag = 'input window, operand 3, single buffered']
    #allocation9 [shape = 's32[1]{0}', space=sflag, size = 0x4, scoped, tag = 'scoped memory for tpu_custom_call.1']
    #allocation10 [shape = 'u8[4096]{0}', space=vmem, size = 0x1000, scoped, tag = 'output window, operand 0, single buffered']
    %10 = vsyncpa [#allocation3], 0
    %11 = vsyncpa [#allocation6], 0
    %12 = vsyncpa [#allocation9], 0
    %13 = vsyncpa [#allocation4], 0
    // Predicated region
    $region2: #{tpu_custom_call.1} parent=1 // pred_check
      _
    $region3: #{tpu_custom_call.1} parent=1 // pred_check_branch
      %15 = sbr.rel (0) target = $region5
    $region4: #{tpu_custom_call.1} parent=1 // pred_region
      %17 = vsyncadd [#allocation3], 0
      %s19 = sshll.u32 %s0, 4
      %s20 = int_to_ptr.hbm [resolvable:$true] %s19
      %s21 = sshll.u32 [#allocation2], 4
      %s22 = int_to_ptr.vmem [resolvable:$true] %s21
      %24 = dma.hbm_to_vmem [thread:$0]  %s20, 128, %s22, [#allocation3]
    $region5: #{tpu_custom_call.1} parent=1 // pred_fallthru
      _
    // Predicated region
    $region6: #{tpu_custom_call.1} parent=1 // pred_check
      _
    $region7: #{tpu_custom_call.1} parent=1 // pred_check_branch
      %26 = sbr.rel (0) target = $region9
    $region8: #{tpu_custom_call.1} parent=1 // pred_region
      %28 = vsyncadd [#allocation6], 0
      %s29 = sshll.u32 %s1, 4
      %s30 = int_to_ptr.hbm [resolvable:$true] %s29
      %s31 = sshll.u32 [#allocation5], 4
      %s32 = int_to_ptr.vmem [resolvable:$true] %s31
      %37 = dma.hbm_to_vmem [thread:$0]  %s30, 2048, %s32, [#allocation6], 128, 128, 8
    $region9: #{tpu_custom_call.1} parent=1 // pred_fallthru
      _
    // Predicated region
    $region10: #{tpu_custom_call.1} parent=1 // pred_check
      _
    $region11: #{tpu_custom_call.1} parent=1 // pred_check_branch
      %39 = sbr.rel (0) target = $region13
    $region12: #{tpu_custom_call.1} parent=1 // pred_region
      %41 = vsyncadd [#allocation6], 0
      %s42 = sshll.u32 %s2, 4
      %s43 = int_to_ptr.hbm [resolvable:$true] %s42
      %s44 = sshll.u32 [#allocation7], 4
      %s45 = int_to_ptr.vmem [resolvable:$true] %s44
      %50 = dma.hbm_to_vmem [thread:$0]  %s43, 2048, %s45, [#allocation6], 128, 128, 8
    $region13: #{tpu_custom_call.1} parent=1 // pred_fallthru
      _
    // Predicated region
    $region14: #{tpu_custom_call.1} parent=1 // pred_check
      _
    $region15: #{tpu_custom_call.1} parent=1 // pred_check_branch
      %52 = sbr.rel (0) target = $region17
    $region16: #{tpu_custom_call.1} parent=1 // pred_region
      %54 = vsyncadd [#allocation9], 0
      %s55 = sshll.u32 %s3, 4
      %s56 = int_to_ptr.hbm [resolvable:$true] %s55
      %s57 = sshll.u32 [#allocation8], 4
      %s58 = int_to_ptr.vmem [resolvable:$true] %s57
      %63 = dma.hbm_to_vmem [thread:$0]  %s56, 2048, %s58, [#allocation9], 128, 128, 8
    $region17: #{tpu_custom_call.1} parent=1 // pred_fallthru
      _
    // Predicated region
    $region18: #{tpu_custom_call.1} parent=1 // pred_check
      _
    $region19: #{tpu_custom_call.1} parent=1 // pred_check_branch
      %65 = sbr.rel (0) target = $region21
    $region20: #{tpu_custom_call.1} parent=1 // pred_region
      _
    $region21: #{tpu_custom_call.1} parent=1 // pred_fallthru
      _
    // Predicated region
    $region22: #{tpu_custom_call.1} parent=1 // pred_check
      _
    $region23: #{tpu_custom_call.1} parent=1 // pred_check_branch
      %67 = sbr.rel (0) target = $region25
    $region24: #{tpu_custom_call.1} parent=1 // pred_region
      %69 = dma.done [#allocation3], 128
    $region25: #{tpu_custom_call.1} parent=1 // pred_fallthru
      _
    // Predicated region
    $region26: #{tpu_custom_call.1} parent=1 // pred_check
      _
    $region27: #{tpu_custom_call.1} parent=1 // pred_check_branch
      %71 = sbr.rel (0) target = $region29
    $region28: #{tpu_custom_call.1} parent=1 // pred_region
      %73 = dma.done [#allocation6], 2048
    $region29: #{tpu_custom_call.1} parent=1 // pred_fallthru
      _
    // Predicated region
    $region30: #{tpu_custom_call.1} parent=1 // pred_check
      _
    $region31: #{tpu_custom_call.1} parent=1 // pred_check_branch
      %75 = sbr.rel (0) target = $region33
    $region32: #{tpu_custom_call.1} parent=1 // pred_region
      %77 = dma.done [#allocation6], 2048
    $region33: #{tpu_custom_call.1} parent=1 // pred_fallthru
      _
    // Predicated region
    $region34: #{tpu_custom_call.1} parent=1 // pred_check
      _
    $region35: #{tpu_custom_call.1} parent=1 // pred_check_branch
      %79 = sbr.rel (0) target = $region37
    $region36: #{tpu_custom_call.1} parent=1 // pred_region
      %81 = dma.done [#allocation9], 2048
    $region37: #{tpu_custom_call.1} parent=1 // pred_fallthru
      _
    %v82 = vld [vmem:[#allocation2] sm:$0xff]
    %v83 = vld [vmem:[#allocation5] sm:$0xff]
    %v84 = vld [vmem:[#allocation5 + $0x8] sm:$0xff]
    %v85 = vld [vmem:[#allocation5 + $0x10] sm:$0xff]
    %v86 = vld [vmem:[#allocation5 + $0x18] sm:$0xff]
    %v87 = vld [vmem:[#allocation5 + $0x20] sm:$0xff]
    %v88 = vld [vmem:[#allocation5 + $0x28] sm:$0xff]
    %v89 = vld [vmem:[#allocation5 + $0x30] sm:$0xff]
    %v90 = vld [vmem:[#allocation5 + $0x38] sm:$0xff]
    %v91 = vld [vmem:[#allocation5 + $0x40] sm:$0xff]
    %v92 = vld [vmem:[#allocation5 + $0x48] sm:$0xff]
    %v93 = vld [vmem:[#allocation5 + $0x50] sm:$0xff]
    %v94 = vld [vmem:[#allocation5 + $0x58] sm:$0xff]
    %v95 = vld [vmem:[#allocation5 + $0x60] sm:$0xff]
    %v96 = vld [vmem:[#allocation5 + $0x68] sm:$0xff]
    %v97 = vld [vmem:[#allocation5 + $0x70] sm:$0xff]
    %v98 = vld [vmem:[#allocation5 + $0x78] sm:$0xff]
    %99 = vmatpush.msra.mxu0 %v98
    %100 = vmatpush.msra.mxu0 %v97
    %101 = vmatpush.msra.mxu0 %v96
    %102 = vmatpush.msra.mxu0 %v95
    %103 = vmatpush.msra.mxu0 %v94
    %104 = vmatpush.msra.mxu0 %v93
    %105 = vmatpush.msra.mxu0 %v92
    %106 = vmatpush.msra.mxu0 %v91
    %107 = vmatpush.msra.mxu0 %v90
    %108 = vmatpush.msra.mxu0 %v89
    %109 = vmatpush.msra.mxu0 %v88
    %110 = vmatpush.msra.mxu0 %v87
    %111 = vmatpush.msra.mxu0 %v86
    %112 = vmatpush.msra.mxu0 %v85
    %113 = vmatpush.msra.mxu0 %v84
    %114 = vmatpush.msra.mxu0 %v83
    %115 = vmatmul.f32.gmra.mxu0 %v82
    %v116 = vpop.f32.mrf.mxu0
    %v117 = vadd.f32 0.0, %v116
    %118 = vdwg.mxu0
    %v119 = vmax.f32 %v117, 0.0
    %v120 = vld [vmem:[#allocation7] sm:$0xff]
    %v121 = vld [vmem:[#allocation7 + $0x8] sm:$0xff]
    %v122 = vld [vmem:[#allocation7 + $0x10] sm:$0xff]
    %v123 = vld [vmem:[#allocation7 + $0x18] sm:$0xff]
    %v124 = vld [vmem:[#allocation7 + $0x20] sm:$0xff]
    %v125 = vld [vmem:[#allocation7 + $0x28] sm:$0xff]
    %v126 = vld [vmem:[#allocation7 + $0x30] sm:$0xff]
    %v127 = vld [vmem:[#allocation7 + $0x38] sm:$0xff]
    %v128 = vld [vmem:[#allocation7 + $0x40] sm:$0xff]
    %v129 = vld [vmem:[#allocation7 + $0x48] sm:$0xff]
    %v130 = vld [vmem:[#allocation7 + $0x50] sm:$0xff]
    %v131 = vld [vmem:[#allocation7 + $0x58] sm:$0xff]
    %v132 = vld [vmem:[#allocation7 + $0x60] sm:$0xff]
    %v133 = vld [vmem:[#allocation7 + $0x68] sm:$0xff]
    %v134 = vld [vmem:[#allocation7 + $0x70] sm:$0xff]
    %v135 = vld [vmem:[#allocation7 + $0x78] sm:$0xff]
    %136 = vmatpush.msra.mxu0 %v135
    %137 = vmatpush.msra.mxu0 %v134
    %138 = vmatpush.msra.mxu0 %v133
    %139 = vmatpush.msra.mxu0 %v132
    %140 = vmatpush.msra.mxu0 %v131
    %141 = vmatpush.msra.mxu0 %v130
    %142 = vmatpush.msra.mxu0 %v129
    %143 = vmatpush.msra.mxu0 %v128
    %144 = vmatpush.msra.mxu0 %v127
    %145 = vmatpush.msra.mxu0 %v126
    %146 = vmatpush.msra.mxu0 %v125
    %147 = vmatpush.msra.mxu0 %v124
    %148 = vmatpush.msra.mxu0 %v123
    %149 = vmatpush.msra.mxu0 %v122
    %150 = vmatpush.msra.mxu0 %v121
    %151 = vmatpush.msra.mxu0 %v120
    %152 = vmatmul.f32.gmra.mxu0 %v119
    %v153 = vpop.f32.mrf.mxu0
    %v154 = vadd.f32 0.0, %v153
    %155 = vdwg.mxu0
    %v156 = vmax.f32 %v154, 0.0
    %v157 = vmul.f32 %v82, 0.15
    %v158 = vmul.f32 %v156, 0.85
    %v159 = vadd.f32 %v157, %v158
    %v160 = vmax.f32 %v159, 0.0
    %v161 = vld [vmem:[#allocation8] sm:$0xff]
    %v162 = vld [vmem:[#allocation8 + $0x8] sm:$0xff]
    %v163 = vld [vmem:[#allocation8 + $0x10] sm:$0xff]
    %v164 = vld [vmem:[#allocation8 + $0x18] sm:$0xff]
    %v165 = vld [vmem:[#allocation8 + $0x20] sm:$0xff]
    %v166 = vld [vmem:[#allocation8 + $0x28] sm:$0xff]
    %v167 = vld [vmem:[#allocation8 + $0x30] sm:$0xff]
    %v168 = vld [vmem:[#allocation8 + $0x38] sm:$0xff]
    %v169 = vld [vmem:[#allocation8 + $0x40] sm:$0xff]
    %v170 = vld [vmem:[#allocation8 + $0x48] sm:$0xff]
    %v171 = vld [vmem:[#allocation8 + $0x50] sm:$0xff]
    %v172 = vld [vmem:[#allocation8 + $0x58] sm:$0xff]
    %v173 = vld [vmem:[#allocation8 + $0x60] sm:$0xff]
    %v174 = vld [vmem:[#allocation8 + $0x68] sm:$0xff]
    %v175 = vld [vmem:[#allocation8 + $0x70] sm:$0xff]
    %v176 = vld [vmem:[#allocation8 + $0x78] sm:$0xff]
    %v177 = vld [vmem:[%s4] sm:$0x1]
    %v179 = vperm.slane %v177, 0
    %181 = vmatpush.msra.mxu0 %v176
    %182 = vmatpush.msra.mxu0 %v175
    %183 = vmatpush.msra.mxu0 %v174
    %184 = vmatpush.msra.mxu0 %v173
    %185 = vmatpush.msra.mxu0 %v172
    %186 = vmatpush.msra.mxu0 %v171
    %187 = vmatpush.msra.mxu0 %v170
    %188 = vmatpush.msra.mxu0 %v169
    %189 = vmatpush.msra.mxu0 %v168
    %190 = vmatpush.msra.mxu0 %v167
    %191 = vmatpush.msra.mxu0 %v166
    %192 = vmatpush.msra.mxu0 %v165
    %193 = vmatpush.msra.mxu0 %v164
    %194 = vmatpush.msra.mxu0 %v163
    %195 = vmatpush.msra.mxu0 %v162
    %196 = vmatpush.msra.mxu0 %v161
    %197 = vmatmul.f32.gmra.mxu0 %v160
    %v198 = vpop.f32.mrf.mxu0
    %v199 = vadd.f32 %v179, %v198
    %200 = vdwg.mxu0
    %201 = vst [vmem:[#allocation10] sm:$0xff] %v199
    // Predicated region
    $region38: #{tpu_custom_call.1} parent=1 // pred_check
      _
    $region39: #{tpu_custom_call.1} parent=1 // pred_check_branch
      %203 = sbr.rel (0) target = $region41
    $region40: #{tpu_custom_call.1} parent=1 // pred_region
      %205 = vsyncadd [#allocation4], 0
      %s207 = sshll.u32 [#allocation10], 4
      %s208 = int_to_ptr.vmem [resolvable:$true] %s207
      %s209 = sshll.u32 %s5, 4
      %s210 = int_to_ptr.hbm [resolvable:$true] %s209
      %212 = dma.vmem_to_hbm [thread:$0]  %s208, 128, %s210, [#allocation4]
    $region41: #{tpu_custom_call.1} parent=1 // pred_fallthru
      _
    // Predicated region
    $region42: #{tpu_custom_call.1} parent=1 // pred_check
      _
    $region43: #{tpu_custom_call.1} parent=1 // pred_check_branch
      %214 = sbr.rel (0) target = $region45
    $region44: #{tpu_custom_call.1} parent=1 // pred_region
      %216 = dma.done [#allocation4], 128
    $region45: #{tpu_custom_call.1} parent=1 // pred_fallthru
      _
    %217 = vsyncpa [#allocation3], 1
    %218 = vsyncpa [#allocation6], 1
    %219 = vsyncpa [#allocation9], 1
    %220 = vsyncpa [#allocation4], 1

</llo_original>
